<compile_context>
chip_gen: v5e
topology: v5e:2x2
jax: 0.10.0
libtpu: 0.0.40
codegen_flags: <defaults>
</compile_context>

<pallas_src>
import jax
import jax.numpy as jnp
from jax.experimental import pallas as pl
from jax.experimental.pallas import tpu as pltpu

# ---- small "config" (stand-ins for MODEL_CONFIG / VNEMOLEX_EMOTIONS) -------
B = 8            # batch
S = 8            # sequence length
H = 128          # bert hidden size (pooler_output dim)
L = 8            # len(VNEMOLEX_EMOTIONS) lexicon feature dim
L_PAD = 16       # lexicon K padded to a bf16 sublane tile
HIDDEN = 128     # MODEL_CONFIG['hidden_size']
C = 6            # num_classes
VOCAB = 64       # real vocab
VOCAB_PAD = 128  # lane-dense padded vocab
OUT_PAD = 128    # lane-dense padded logit width (first C columns are real)

# row offsets inside the packed bf16 weight blob (all 16-row aligned)
R_EMB = 0                    # (VOCAB_PAD, H)      token embedding table (zero-padded rows)
R_WP  = R_EMB + VOCAB_PAD    # (H, H)              pooler dense
R_W1H = R_WP + H             # (H, HIDDEN)         combiner rows for BERT features
R_W2  = R_W1H + H            # (HIDDEN, OUT_PAD)   classifier (zero-padded cols)
R_W1L = R_W2 + HIDDEN        # (L_PAD, HIDDEN)     combiner rows for lexicon (zero-padded rows)
BLOB_ROWS = R_W1L + L_PAD    # 528


def emotion_kernel(ins_ref, w_ref, b_ref, out_ref):
    # ins_ref : (TB, 128)      f32   lanes [:S]=bitcast(int32 ids), [S:2S]=mask,
    #                                [2S:2S+L]=lexicon, rest zero
    # w_ref   : (528, 128)     bf16  packed [emb; wp; w1h; w2pad; w1l_pad]
    # b_ref   : (8, 128)       f32   rows: 0=bp, 1=b1, 2=b2pad, rest zero
    # out_ref : (TB, OUT_PAD)  bf16  lane-dense logits (first C cols real)
    ins = ins_ref[...]                                     # (TB, 128) f32
    ids = pltpu.bitcast(ins, jnp.int32)[:, :S]             # (TB, S) int32
    mask = ins[:, S:2 * S]                                 # (TB, S) f32
    lex = ins[:, 2 * S:2 * S + L_PAD]                      # (TB, 16) f32 (zero tail)
    tb = ins.shape[0]

    # --- stubbed BERT encoder + pooler -------------------------------------
    # TODO(synk): full multi-layer transformer encoder not reproduced; pooled
    # representation is a deterministic masked-mean + tanh(dense) stand-in.
    #
    # Mask-weighted one-hot counts (single select, lane-dense vocab axis):
    #   counts[b, v] = sum_s mask[b, s] * (ids[b, s] == v)
    v_iota = jax.lax.broadcasted_iota(jnp.int32, (tb, S, VOCAB_PAD), 2)
    counts = jnp.sum(
        jnp.where(ids[:, :, None] == v_iota, mask[:, :, None], 0.0),
        axis=1)                                            # (TB, 128) f32, exact small ints

    msum = jnp.sum(mask, axis=1, keepdims=True)            # (TB, 1)
    inv_msum = pl.reciprocal(jnp.maximum(msum, 1.0), approx=False)

    # gather + masked mean as one K=128 bf16 MXU contraction
    emb = w_ref[R_EMB:R_EMB + VOCAB_PAD, :]                # (128, H) bf16
    pooled = jnp.dot(counts.astype(jnp.bfloat16), emb,
                     preferred_element_type=jnp.float32) * inv_msum   # (TB, H) f32

    wp = w_ref[R_WP:R_WP + H, :]                           # (H, H) bf16
    pooler = jnp.tanh(
        jnp.dot(pooled.astype(jnp.bfloat16), wp,
                preferred_element_type=jnp.float32) + b_ref[0:1, :])  # (TB, H) f32

    # dropout(pooler) -> identity in eval mode

    # --- feature_combiner: Linear(H + L -> HIDDEN) on concat, then ReLU -----
    w1h = w_ref[R_W1H:R_W1H + H, :]                        # (H, HIDDEN) bf16
    w1l = w_ref[R_W1L:R_W1L + L_PAD, :]                    # (16, HIDDEN) bf16 (zero rows >= L)
    hidden = (jnp.dot(pooler.astype(jnp.bfloat16), w1h,
                      preferred_element_type=jnp.float32)
              + jnp.dot(lex.astype(jnp.bfloat16), w1l,
                        preferred_element_type=jnp.float32)
              + b_ref[1:2, :])                             # (TB, HIDDEN) f32
    hidden = jnp.maximum(hidden, 0.0)

    # dropout(hidden) -> identity in eval mode

    # --- classifier: Linear(HIDDEN -> C), lane-dense padded to 128, bf16 out
    w2 = w_ref[R_W2:R_W2 + HIDDEN, :]                      # (HIDDEN, OUT_PAD) bf16
    logits = jnp.dot(hidden.astype(jnp.bfloat16), w2,
                     preferred_element_type=jnp.float32) + b_ref[2:3, :]
    out_ref[...] = logits.astype(out_ref.dtype)


def _round_up(x, m):
    return ((x + m - 1) // m) * m


def emotion_classifier_forward(input_ids, attention_mask, lexicon_features,
                               w_blob, biases, batch_tile=512):
    Bn, Sn = input_ids.shape
    assert Sn == S and lexicon_features.shape[1] == L

    # Batch tiling: big batches -> 512-row tiles; medium batches -> >=2 tiles
    # so both v7x TensorCores get work; tiny batches -> one (8-aligned) tile.
    if Bn >= 2 * batch_tile:
        TB = batch_tile
    elif Bn >= 256:
        TB = _round_up(pl.cdiv(Bn, 2), 8)
    else:
        TB = _round_up(Bn, 8)
    Bp = _round_up(Bn, TB)

    # Pack ids | mask | lexicon into one lane-dense (Bp, 128) f32 slab:
    # one aligned 128-lane DMA per tile.  int32 ids are bit-cast into the
    # first S lanes (bit-exact) and bit-cast back inside the kernel.
    ids_bits = jax.lax.bitcast_convert_type(input_ids.astype(jnp.int32),
                                            jnp.float32)
    packed = jnp.zeros((Bp, 128), jnp.float32)
    packed = packed.at[:Bn, :S].set(ids_bits)
    packed = packed.at[:Bn, S:2 * S].set(attention_mask.astype(jnp.float32))
    packed = packed.at[:Bn, 2 * S:2 * S + L].set(
        lexicon_features.astype(jnp.float32))

    out = pl.pallas_call(
        emotion_kernel,
        out_shape=jax.ShapeDtypeStruct((Bp, OUT_PAD), jnp.bfloat16),
        grid=(Bp // TB,),
        in_specs=[
            pl.BlockSpec((TB, 128), lambda i: (i, 0)),          # ids|mask|lex
            pl.BlockSpec(w_blob.shape, lambda i: (0, 0)),       # weights (resident)
            pl.BlockSpec(biases.shape, lambda i: (0, 0)),       # biases  (resident)
        ],
        out_specs=pl.BlockSpec((TB, OUT_PAD), lambda i: (i, 0)),
        compiler_params=pltpu.CompilerParams(
            dimension_semantics=("parallel",)),
    )(packed, w_blob, biases)

    # Consumers at scale should take the padded bf16 slab directly; this tiny
    # (B, C) slice + f32 cast only serves the nn.Module API.
    return out[:Bn, :C].astype(jnp.float32)


def init_params(key):
    ks = jax.random.split(key, 8)
    scale = 0.02
    emb = scale * jax.random.normal(ks[0], (VOCAB, H), jnp.float32)
    wp  = scale * jax.random.normal(ks[1], (H, H), jnp.float32)       # pooler dense
    bp  = scale * jax.random.normal(ks[2], (H,), jnp.float32)
    w1h = scale * jax.random.normal(ks[3], (H, HIDDEN), jnp.float32)  # combiner (bert rows)
    w1l = scale * jax.random.normal(ks[4], (L, HIDDEN), jnp.float32)  # combiner (lexicon rows)
    b1  = scale * jax.random.normal(ks[5], (HIDDEN,), jnp.float32)
    w2  = scale * jax.random.normal(ks[6], (HIDDEN, C), jnp.float32)  # classifier
    b2  = scale * jax.random.normal(ks[7], (C,), jnp.float32)
    return emb, wp, bp, w1h, w1l, b1, w2, b2


def pack_params(params):
    """Pack all weights into one tile-aligned bf16 blob + one (8,128) f32 bias."""
    emb, wp, bp, w1h, w1l, b1, w2, b2 = params
    embp = jnp.zeros((VOCAB_PAD, H), jnp.float32).at[:VOCAB].set(emb)
    w1lp = jnp.zeros((L_PAD, HIDDEN), jnp.float32).at[:L].set(w1l)
    w2p = jnp.zeros((HIDDEN, OUT_PAD), jnp.float32).at[:, :C].set(w2)
    blob = jnp.concatenate([embp, wp, w1h, w2p, w1lp],
                           axis=0).astype(jnp.bfloat16)
    assert blob.shape == (BLOB_ROWS, 128)
    b2p = jnp.zeros((OUT_PAD,), jnp.float32).at[:C].set(b2)
    biases = jnp.zeros((8, 128), jnp.float32)
    biases = biases.at[0].set(bp).at[1].set(b1).at[2].set(b2p)
    return blob, biases


def reference_forward(input_ids, mask, lex, params):
    """Pure-JAX reference mirroring the kernel's bf16 weight/activation casts."""
    emb, wp, bp, w1h, w1l, b1, w2, b2 = params
    q = lambda w: w.astype(jnp.bfloat16).astype(jnp.float32)   # weight quant
    bf = lambda a: a.astype(jnp.bfloat16).astype(jnp.float32)  # MXU LHS rounding
    emb, wp, w1h, w1l, w2 = map(q, (emb, wp, w1h, w1l, w2))

    tok = jnp.take(emb, input_ids, axis=0)                     # (B, S, H)
    msum = jnp.maximum(jnp.sum(mask, axis=1, keepdims=True), 1.0)
    pooled = jnp.sum(tok * mask[:, :, None], axis=1) / msum
    pooler = jnp.tanh(bf(pooled) @ wp + bp)
    hidden = jnp.maximum(bf(pooler) @ w1h + bf(lex) @ w1l + b1, 0.0)
    return bf(hidden) @ w2 + b2


if __name__ == "__main__":
    key = jax.random.PRNGKey(0)
    k_param, k_ids, k_lex = jax.random.split(key, 3)

    params = init_params(k_param)
    w_blob, biases = pack_params(params)

    input_ids = jax.random.randint(k_ids, (B, S), 0, VOCAB, dtype=jnp.int32)
    attention_mask = jnp.ones((B, S), jnp.float32).at[:, S // 2:].set(
        jnp.where(jnp.arange(B)[:, None] % 2 == 0, 1.0, 0.0))  # some padding
    lexicon_features = jax.random.uniform(k_lex, (B, L), jnp.float32)

    logits = emotion_classifier_forward(input_ids, attention_mask,
                                        lexicon_features, w_blob, biases)
    logits = jax.block_until_ready(logits)

    ref = reference_forward(input_ids, attention_mask, lexicon_features, params)
    assert logits.shape == (B, C)
    assert jnp.allclose(logits, ref, atol=5e-3, rtol=2e-2), (
        float(jnp.max(jnp.abs(logits - ref))))

    print("KERNEL_OK")
</pallas_src>

<mosaic_0001>
module attributes {stable_mosaic.version = 11 : i64} {
  func.func @emotion_kernel(%arg0: i32, %arg1: memref<8x128xf32, #tpu.memory_space<vmem>>, %arg2: memref<528x128xbf16, #tpu.memory_space<vmem>>, %arg3: memref<8x128xf32, #tpu.memory_space<vmem>>, %arg4: memref<8x128xbf16, #tpu.memory_space<vmem>>) attributes {dimension_semantics = [#tpu.dimension_semantics<parallel>], iteration_bounds = array<i64: 1>, scalar_prefetch = 0 : i64, scratch_operands = 0 : i64, tpu.core_type = #tpu.core_type<tc>, window_params = [{transform_indices = @transform_0, window_bounds = array<i64: 8, 128>}, {pipeline_mode = #tpu.pipeline_mode<synchronous>, transform_indices = @transform_1, window_bounds = array<i64: 528, 128>}, {pipeline_mode = #tpu.pipeline_mode<synchronous>, transform_indices = @transform_2, window_bounds = array<i64: 8, 128>}, {transform_indices = @transform_3, window_bounds = array<i64: 8, 128>}]} {
    %c0 = arith.constant 0 : index
    %c0_0 = arith.constant 0 : index
    %0 = vector.load %arg1[%c0, %c0_0] : memref<8x128xf32, #tpu.memory_space<vmem>>, vector<8x128xf32>
    %1 = tpu.bitcast %0 : vector<8x128xf32> -> vector<8x128xi32>
    %2 = vector.extract_strided_slice %1 {offsets = [0, 0], sizes = [8, 8], strides = [1, 1]} : vector<8x128xi32> to vector<8x8xi32>
    %3 = vector.extract_strided_slice %0 {offsets = [0, 8], sizes = [8, 8], strides = [1, 1]} : vector<8x128xf32> to vector<8x8xf32>
    %4 = vector.extract_strided_slice %0 {offsets = [0, 16], sizes = [8, 16], strides = [1, 1]} : vector<8x128xf32> to vector<8x16xf32>
    %5 = tpu.iota {dimensions = array<i32: 2>} : vector<8x8x128xi32>
    %6 = vector.shape_cast %2 : vector<8x8xi32> to vector<8x8x1xi32>
    %7 = vector.broadcast %6 : vector<8x8x1xi32> to vector<8x8x128xi32>
    %8 = arith.cmpi eq, %7, %5 : vector<8x8x128xi32>
    %9 = vector.shape_cast %3 : vector<8x8xf32> to vector<8x8x1xf32>
    %cst = arith.constant 0.000000e+00 : f32
    %10 = vector.shape_cast %9 : vector<8x8x1xf32> to vector<8x8x1xf32>
    %11 = vector.broadcast %10 : vector<8x8x1xf32> to vector<8x8x128xf32>
    %12 = vector.broadcast %cst : f32 to vector<8x8x128xf32>
    %13 = arith.select %8, %11, %12 : vector<8x8x128xi1>, vector<8x8x128xf32>
    %cst_1 = arith.constant dense<0.000000e+00> : vector<8x128xf32>
    %14 = vector.multi_reduction <add>, %13, %cst_1 [1] : vector<8x8x128xf32> to vector<8x128xf32>
    %cst_2 = arith.constant dense<0.000000e+00> : vector<8xf32>
    %15 = vector.multi_reduction <add>, %3, %cst_2 [1] : vector<8x8xf32> to vector<8xf32>
    %16 = vector.shape_cast %15 : vector<8xf32> to vector<8x1xf32>
    %cst_3 = arith.constant 1.000000e+00 : f32
    %17 = vector.broadcast %cst_3 : f32 to vector<8x1xf32>
    %18 = arith.maximumf %16, %17 : vector<8x1xf32>
    %19 = tpu.reciprocal %18 : vector<8x1xf32> -> vector<8x1xf32>
    %c0_4 = arith.constant 0 : index
    %c0_5 = arith.constant 0 : index
    %20 = vector.load %arg2[%c0_4, %c0_5] : memref<528x128xbf16, #tpu.memory_space<vmem>>, vector<128x128xbf16>
    %21 = arith.truncf %14 : vector<8x128xf32> to vector<8x128xbf16>
    %cst_6 = arith.constant dense<0.000000e+00> : vector<8x128xf32>
    %22 = tpu.matmul %21, %20, %cst_6 {dimension_numbers = #tpu.dot_dimension_numbers<[1], [0], [0], [1], [0, 0, 1, 1], [], []>} : vector<8x128xbf16>, vector<128x128xbf16>, vector<8x128xf32> -> vector<8x128xf32>
    %23 = vector.broadcast %19 : vector<8x1xf32> to vector<8x128xf32>
    %24 = arith.mulf %22, %23 : vector<8x128xf32>
    %c128 = arith.constant 128 : index
    %c0_7 = arith.constant 0 : index
    %25 = vector.load %arg2[%c128, %c0_7] : memref<528x128xbf16, #tpu.memory_space<vmem>>, vector<128x128xbf16>
    %26 = arith.truncf %24 : vector<8x128xf32> to vector<8x128xbf16>
    %cst_8 = arith.constant dense<0.000000e+00> : vector<8x128xf32>
    %27 = tpu.matmul %26, %25, %cst_8 {dimension_numbers = #tpu.dot_dimension_numbers<[1], [0], [0], [1], [0, 0, 1, 1], [], []>} : vector<8x128xbf16>, vector<128x128xbf16>, vector<8x128xf32> -> vector<8x128xf32>
    %c0_9 = arith.constant 0 : index
    %c0_10 = arith.constant 0 : index
    %28 = vector.load %arg3[%c0_9, %c0_10] : memref<8x128xf32, #tpu.memory_space<vmem>>, vector<1x128xf32>
    %29 = vector.broadcast %28 : vector<1x128xf32> to vector<8x128xf32>
    %30 = arith.addf %27, %29 : vector<8x128xf32>
    %31 = math.tanh %30 : vector<8x128xf32>
    %c256 = arith.constant 256 : index
    %c0_11 = arith.constant 0 : index
    %32 = vector.load %arg2[%c256, %c0_11] : memref<528x128xbf16, #tpu.memory_space<vmem>>, vector<128x128xbf16>
    %c512 = arith.constant 512 : index
    %c0_12 = arith.constant 0 : index
    %33 = vector.load %arg2[%c512, %c0_12] : memref<528x128xbf16, #tpu.memory_space<vmem>>, vector<16x128xbf16>
    %34 = arith.truncf %31 : vector<8x128xf32> to vector<8x128xbf16>
    %cst_13 = arith.constant dense<0.000000e+00> : vector<8x128xf32>
    %35 = tpu.matmul %34, %32, %cst_13 {dimension_numbers = #tpu.dot_dimension_numbers<[1], [0], [0], [1], [0, 0, 1, 1], [], []>} : vector<8x128xbf16>, vector<128x128xbf16>, vector<8x128xf32> -> vector<8x128xf32>
    %36 = arith.truncf %4 : vector<8x16xf32> to vector<8x16xbf16>
    %cst_14 = arith.constant dense<0.000000e+00> : vector<8x128xf32>
    %37 = tpu.matmul %36, %33, %cst_14 {dimension_numbers = #tpu.dot_dimension_numbers<[1], [0], [0], [1], [0, 0, 1, 1], [], []>} : vector<8x16xbf16>, vector<16x128xbf16>, vector<8x128xf32> -> vector<8x128xf32>
    %38 = arith.addf %35, %37 : vector<8x128xf32>
    %c1 = arith.constant 1 : index
    %c0_15 = arith.constant 0 : index
    %39 = vector.load %arg3[%c1, %c0_15] : memref<8x128xf32, #tpu.memory_space<vmem>>, vector<1x128xf32>
    %40 = vector.broadcast %39 : vector<1x128xf32> to vector<8x128xf32>
    %41 = arith.addf %38, %40 : vector<8x128xf32>
    %cst_16 = arith.constant 0.000000e+00 : f32
    %42 = vector.broadcast %cst_16 : f32 to vector<8x128xf32>
    %43 = arith.maximumf %41, %42 : vector<8x128xf32>
    %c384 = arith.constant 384 : index
    %c0_17 = arith.constant 0 : index
    %44 = vector.load %arg2[%c384, %c0_17] : memref<528x128xbf16, #tpu.memory_space<vmem>>, vector<128x128xbf16>
    %45 = arith.truncf %43 : vector<8x128xf32> to vector<8x128xbf16>
    %cst_18 = arith.constant dense<0.000000e+00> : vector<8x128xf32>
    %46 = tpu.matmul %45, %44, %cst_18 {dimension_numbers = #tpu.dot_dimension_numbers<[1], [0], [0], [1], [0, 0, 1, 1], [], []>} : vector<8x128xbf16>, vector<128x128xbf16>, vector<8x128xf32> -> vector<8x128xf32>
    %c2 = arith.constant 2 : index
    %c0_19 = arith.constant 0 : index
    %47 = vector.load %arg3[%c2, %c0_19] : memref<8x128xf32, #tpu.memory_space<vmem>>, vector<1x128xf32>
    %48 = vector.broadcast %47 : vector<1x128xf32> to vector<8x128xf32>
    %49 = arith.addf %46, %48 : vector<8x128xf32>
    %50 = arith.truncf %49 : vector<8x128xf32> to vector<8x128xbf16>
    %c0_20 = arith.constant 0 : index
    %c0_21 = arith.constant 0 : index
    %51 = vector.load %arg4[%c0_20, %c0_21] : memref<8x128xbf16, #tpu.memory_space<vmem>>, vector<8x128xbf16>
    tpu.vector_store %arg4[%c0_20, %c0_21], %50 {strides = array<i32>} : memref<8x128xbf16, #tpu.memory_space<vmem>>, vector<8x128xbf16>,
    return
  }
  func.func @transform_0(%arg0: i32) -> (i32, i32) {
    %c0_i32 = arith.constant 0 : i32
    %c0_i32_0 = arith.constant 0 : i32
    return %arg0, %c0_i32 : i32, i32
  }
  func.func @transform_1(%arg0: i32) -> (i32, i32) {
    %c0_i32 = arith.constant 0 : i32
    %c0_i32_0 = arith.constant 0 : i32
    %c0_i32_1 = arith.constant 0 : i32
    return %c0_i32, %c0_i32_0 : i32, i32
  }
  func.func @transform_2(%arg0: i32) -> (i32, i32) {
    %c0_i32 = arith.constant 0 : i32
    %c0_i32_0 = arith.constant 0 : i32
    %c0_i32_1 = arith.constant 0 : i32
    return %c0_i32, %c0_i32_0 : i32, i32
  }
  func.func @transform_3(%arg0: i32) -> (i32, i32) {
    %c0_i32 = arith.constant 0 : i32
    %c0_i32_0 = arith.constant 0 : i32
    return %arg0, %c0_i32 : i32, i32
  }
}

</mosaic_0001>

<llo_original>
// kernel: tpu_custom_call.1
$region0: #{tpu_custom_call.1}
  #allocation0 [shape = 'u32[]', space=smem, size = 0x4, offset = 0x4, fixed_abs, tag = 'smem constant byte address 0x4 - core index']
  #allocation1 [shape = 'u32[72,128]{1,0:T(1,128)}', space=vmem, size = 0x9000, scoped, tag = 'internal scratch']
  %s0 = inlined_call_operand.hbm [shape: f32[8,128], index: 0, kind: input, shape index: {}]
  %s1 = inlined_call_operand.hbm [shape: bf16[528,128], index: 1, kind: input, shape index: {}]
  %s2 = inlined_call_operand.hbm [shape: f32[8,128], index: 2, kind: input, shape index: {}]
  %s3 = inlined_call_operand.hbm [shape: bf16[8,128], index: 3, kind: output, shape index: {}]
  %s4 = sld [smem:[#allocation0]]
  $region34: #{tpu_custom_call.1} parent=0
    _
  %s6 = ssub.s32 1, %s4
  %s7 = scalar_select 0, %s6, %s4
  $region1: #{tpu_custom_call.1} parent=0
    #allocation2 [shape = 'u8[4096]{0}', space=vmem, size = 0x1000, scoped, tag = 'input window, operand 0, single buffered']
    #allocation3 [shape = 's32[1]{0}', space=sflag, size = 0x4, scoped, tag = 'scoped memory for tpu_custom_call.1']
    #allocation4 [shape = 's32[1]{0}', space=sflag, size = 0x4, scoped, tag = 'scoped memory for tpu_custom_call.1']
    #allocation5 [shape = 'u8[135168]{0}', space=vmem, size = 0x21000, scoped, tag = 'input window, operand 1, single buffered']
    #allocation6 [shape = 's32[1]{0}', space=sflag, size = 0x4, scoped, tag = 'scoped memory for tpu_custom_call.1']
    #allocation7 [shape = 'u8[4096]{0}', space=vmem, size = 0x1000, scoped, tag = 'input window, operand 2, single buffered']
    #allocation8 [shape = 'u8[2048]{0}', space=vmem, size = 0x800, scoped, tag = 'output window, operand 0, single buffered']
    %8 = vsyncpa [#allocation3], 0
    %9 = vsyncpa [#allocation6], 0
    %10 = vsyncpa [#allocation4], 0
    // Predicated region
    $region2: #{tpu_custom_call.1} parent=1 // pred_check
      _
    $region3: #{tpu_custom_call.1} parent=1 // pred_check_branch
      %12 = sbr.rel (0) target = $region5
    $region4: #{tpu_custom_call.1} parent=1 // pred_region
      %14 = vsyncadd [#allocation3], 0
      %s16 = sshll.u32 %s0, 4
      %s17 = int_to_ptr.hbm [resolvable:$true] %s16
      %s18 = sshll.u32 [#allocation2], 4
      %s19 = int_to_ptr.vmem [resolvable:$true] %s18
      %21 = dma.hbm_to_vmem [thread:$0]  %s17, 128, %s19, [#allocation3]
    $region5: #{tpu_custom_call.1} parent=1 // pred_fallthru
      _
    // Predicated region
    $region6: #{tpu_custom_call.1} parent=1 // pred_check
      _
    $region7: #{tpu_custom_call.1} parent=1 // pred_check_branch
      %23 = sbr.rel (0) target = $region9
    $region8: #{tpu_custom_call.1} parent=1 // pred_region
      %25 = vsyncadd [#allocation6], 0
      %s26 = sshll.u32 %s1, 4
      %s27 = int_to_ptr.hbm [resolvable:$true] %s26
      %s28 = sshll.u32 [#allocation5], 4
      %s29 = int_to_ptr.vmem [resolvable:$true] %s28
      %34 = dma.hbm_to_vmem [thread:$0]  %s27, 4224, %s29, [#allocation6], 64, 64, 4
    $region9: #{tpu_custom_call.1} parent=1 // pred_fallthru
      _
    // Predicated region
    $region10: #{tpu_custom_call.1} parent=1 // pred_check
      _
    $region11: #{tpu_custom_call.1} parent=1 // pred_check_branch
      %36 = sbr.rel (0) target = $region13
    $region12: #{tpu_custom_call.1} parent=1 // pred_region
      %38 = vsyncadd [#allocation6], 0
      %s40 = sshll.u32 %s2, 4
      %s41 = int_to_ptr.hbm [resolvable:$true] %s40
      %s42 = sshll.u32 [#allocation7], 4
      %s43 = int_to_ptr.vmem [resolvable:$true] %s42
      %45 = dma.hbm_to_vmem [thread:$0]  %s41, 128, %s43, [#allocation6]
    $region13: #{tpu_custom_call.1} parent=1 // pred_fallthru
      _
    // Predicated region
    $region14: #{tpu_custom_call.1} parent=1 // pred_check
      _
    $region15: #{tpu_custom_call.1} parent=1 // pred_check_branch
      %47 = sbr.rel (0) target = $region17
    $region16: #{tpu_custom_call.1} parent=1 // pred_region
      %49 = dma.done [#allocation3], 128
    $region17: #{tpu_custom_call.1} parent=1 // pred_fallthru
      _
    // Predicated region
    $region18: #{tpu_custom_call.1} parent=1 // pred_check
      _
    $region19: #{tpu_custom_call.1} parent=1 // pred_check_branch
      %51 = sbr.rel (0) target = $region21
    $region20: #{tpu_custom_call.1} parent=1 // pred_region
      %53 = dma.done [#allocation6], 4224
    $region21: #{tpu_custom_call.1} parent=1 // pred_fallthru
      _
    // Predicated region
    $region22: #{tpu_custom_call.1} parent=1 // pred_check
      _
    $region23: #{tpu_custom_call.1} parent=1 // pred_check_branch
      %55 = sbr.rel (0) target = $region25
    $region24: #{tpu_custom_call.1} parent=1 // pred_region
      %57 = dma.done [#allocation6], 128
    $region25: #{tpu_custom_call.1} parent=1 // pred_fallthru
      _
    %v59 = vld [vmem:[#allocation2] sm:$0xff]
    %v61 = vlaneseq
    %v62 = vand.u32 %v61, 127
    %v63 = vperm.slane %v59, 0
    %v64 = vlaneseq
    %v65 = vshrl.u32 %v64, 7
    %67 = vset.pattern.permute.xlu0 %v65
    %68 = vperm.xlu0 %67, %v63
    %v69 = vpop.permute.xlu0 %68
    %v70 = vperm.slane %v59, 1
    %v71 = vlaneseq
    %v72 = vshrl.u32 %v71, 7
    %74 = vset.pattern.permute.xlu0 %v72
    %75 = vperm.xlu0 %74, %v70
    %v76 = vpop.permute.xlu0 %75
    %v77 = vperm.slane %v59, 2
    %v78 = vlaneseq
    %v79 = vshrl.u32 %v78, 7
    %81 = vset.pattern.permute.xlu0 %v79
    %82 = vperm.xlu0 %81, %v77
    %v83 = vpop.permute.xlu0 %82
    %v84 = vperm.slane %v59, 3
    %v85 = vlaneseq
    %v86 = vshrl.u32 %v85, 7
    %88 = vset.pattern.permute.xlu0 %v86
    %89 = vperm.xlu0 %88, %v84
    %v90 = vpop.permute.xlu0 %89
    %v91 = vperm.slane %v59, 4
    %v92 = vlaneseq
    %v93 = vshrl.u32 %v92, 7
    %95 = vset.pattern.permute.xlu0 %v93
    %96 = vperm.xlu0 %95, %v91
    %v97 = vpop.permute.xlu0 %96
    %v98 = vperm.slane %v59, 5
    %v99 = vlaneseq
    %v100 = vshrl.u32 %v99, 7
    %102 = vset.pattern.permute.xlu0 %v100
    %103 = vperm.xlu0 %102, %v98
    %v104 = vpop.permute.xlu0 %103
    %v105 = vperm.slane %v59, 6
    %v106 = vlaneseq
    %v107 = vshrl.u32 %v106, 7
    %109 = vset.pattern.permute.xlu0 %v107
    %110 = vperm.xlu0 %109, %v105
    %v111 = vpop.permute.xlu0 %110
    %v112 = vperm.slane %v59, 7
    %v113 = vlaneseq
    %v114 = vshrl.u32 %v113, 7
    %116 = vset.pattern.permute.xlu0 %v114
    %117 = vperm.xlu0 %116, %v112
    %v118 = vpop.permute.xlu0 %117
    %vm119 = vcmp.eq.s32.totalorder %v69, %v62
    %vm120 = vcmp.eq.s32.totalorder %v76, %v62
    %vm121 = vcmp.eq.s32.totalorder %v83, %v62
    %vm122 = vcmp.eq.s32.totalorder %v90, %v62
    %vm123 = vcmp.eq.s32.totalorder %v97, %v62
    %vm124 = vcmp.eq.s32.totalorder %v104, %v62
    %vm125 = vcmp.eq.s32.totalorder %v111, %v62
    %vm126 = vcmp.eq.s32.totalorder %v118, %v62
    %v127 = vperm.slane %v59, 0
    %v128 = vlaneseq
    %v129 = vshrl.u32 %v128, 7
    %v130 = vadd.s32 %v129, 8
    %131 = vset.pattern.permute.xlu0 %v130
    %132 = vperm.xlu0 %131, %v127
    %v133 = vpop.permute.xlu0 %132
    %v134 = vperm.slane %v59, 1
    %v135 = vlaneseq
    %v136 = vshrl.u32 %v135, 7
    %v137 = vadd.s32 %v136, 8
    %138 = vset.pattern.permute.xlu0 %v137
    %139 = vperm.xlu0 %138, %v134
    %v140 = vpop.permute.xlu0 %139
    %v141 = vperm.slane %v59, 2
    %v142 = vlaneseq
    %v143 = vshrl.u32 %v142, 7
    %v144 = vadd.s32 %v143, 8
    %145 = vset.pattern.permute.xlu0 %v144
    %146 = vperm.xlu0 %145, %v141
    %v147 = vpop.permute.xlu0 %146
    %v148 = vperm.slane %v59, 3
    %v149 = vlaneseq
    %v150 = vshrl.u32 %v149, 7
    %v151 = vadd.s32 %v150, 8
    %152 = vset.pattern.permute.xlu0 %v151
    %153 = vperm.xlu0 %152, %v148
    %v154 = vpop.permute.xlu0 %153
    %v155 = vperm.slane %v59, 4
    %v156 = vlaneseq
    %v157 = vshrl.u32 %v156, 7
    %v158 = vadd.s32 %v157, 8
    %159 = vset.pattern.permute.xlu0 %v158
    %160 = vperm.xlu0 %159, %v155
    %v161 = vpop.permute.xlu0 %160
    %v162 = vperm.slane %v59, 5
    %v163 = vlaneseq
    %v164 = vshrl.u32 %v163, 7
    %v165 = vadd.s32 %v164, 8
    %166 = vset.pattern.permute.xlu0 %v165
    %167 = vperm.xlu0 %166, %v162
    %v168 = vpop.permute.xlu0 %167
    %v169 = vperm.slane %v59, 6
    %v170 = vlaneseq
    %v171 = vshrl.u32 %v170, 7
    %v172 = vadd.s32 %v171, 8
    %173 = vset.pattern.permute.xlu0 %v172
    %174 = vperm.xlu0 %173, %v169
    %v175 = vpop.permute.xlu0 %174
    %v176 = vperm.slane %v59, 7
    %v177 = vlaneseq
    %v178 = vshrl.u32 %v177, 7
    %v179 = vadd.s32 %v178, 8
    %180 = vset.pattern.permute.xlu0 %v179
    %181 = vperm.xlu0 %180, %v176
    %v182 = vpop.permute.xlu0 %181
    %v183 = vsel %vm119, %v133, 0.0
    %v184 = vsel %vm120, %v140, 0.0
    %v185 = vsel %vm121, %v147, 0.0
    %v186 = vsel %vm122, %v154, 0.0
    %v187 = vsel %vm123, %v161, 0.0
    %v188 = vsel %vm124, %v168, 0.0
    %v189 = vsel %vm125, %v175, 0.0
    %v190 = vsel %vm126, %v182, 0.0
    %v191 = vrot.slane %v183, 4
    %v192 = vadd.f32 %v183, %v191
    %v193 = vrot.slane %v192, 2
    %v194 = vadd.f32 %v192, %v193
    %v195 = vrot.slane %v194, 1
    %v196 = vadd.f32 %v194, %v195
    %v197 = vrot.slane %v184, 4
    %v198 = vadd.f32 %v184, %v197
    %v199 = vrot.slane %v198, 2
    %v200 = vadd.f32 %v198, %v199
    %v201 = vrot.slane %v200, 1
    %v202 = vadd.f32 %v200, %v201
    %v203 = vrot.slane %v185, 4
    %v204 = vadd.f32 %v185, %v203
    %v205 = vrot.slane %v204, 2
    %v206 = vadd.f32 %v204, %v205
    %v207 = vrot.slane %v206, 1
    %v208 = vadd.f32 %v206, %v207
    %v209 = vrot.slane %v186, 4
    %v210 = vadd.f32 %v186, %v209
    %v211 = vrot.slane %v210, 2
    %v212 = vadd.f32 %v210, %v211
    %v213 = vrot.slane %v212, 1
    %v214 = vadd.f32 %v212, %v213
    %v215 = vrot.slane %v187, 4
    %v216 = vadd.f32 %v187, %v215
    %v217 = vrot.slane %v216, 2
    %v218 = vadd.f32 %v216, %v217
    %v219 = vrot.slane %v218, 1
    %v220 = vadd.f32 %v218, %v219
    %v221 = vrot.slane %v188, 4
    %v222 = vadd.f32 %v188, %v221
    %v223 = vrot.slane %v222, 2
    %v224 = vadd.f32 %v222, %v223
    %v225 = vrot.slane %v224, 1
    %v226 = vadd.f32 %v224, %v225
    %v227 = vrot.slane %v189, 4
    %v228 = vadd.f32 %v189, %v227
    %v229 = vrot.slane %v228, 2
    %v230 = vadd.f32 %v228, %v229
    %v231 = vrot.slane %v230, 1
    %v232 = vadd.f32 %v230, %v231
    %v233 = vrot.slane %v190, 4
    %v234 = vadd.f32 %v190, %v233
    %v235 = vrot.slane %v234, 2
    %v236 = vadd.f32 %v234, %v235
    %v237 = vrot.slane %v236, 1
    %v238 = vadd.f32 %v236, %v237
    %239 = vrot.lane.b32.xlu0 %v59, 120
    %v240 = vpop.permute.xlu0 %239
    %vm242 = vcmask 64512
    %v243 = vsel %vm242, %v240, 0.0
    %244 = vadd.xlane.f32.xlu0 %v243
    %v245 = vpop.xlane.xlu0 %244
    %v246 = vmax.f32 %v245, 1.0
    %v247 = vrcp.pop %v246
    %v248 = vmul.f32 %v246, %v247
    %v249 = vsub.f32 1.0, %v248
    %v250 = vmul.f32 %v247, %v249
    %v251 = vadd.f32 %v247, %v250
    %vm252 = vweird.f32 %v246
    %vm253 = vweird.f32 %v247
    %vm254 = vmor %vm252, %vm253
    %v255 = vsel %vm254, %v247, %v251
    %v256 = vand.u32 2147483647, %v246
    %vm257 = vcmp.eq.f32.partialorder %v256, 8.507059e+37
    %v258 = vand.u32 %v246, 2147483648
    %v259 = vor.u32 1.1754944e-38, %v258
    %v260 = vsel %vm257, %v259, %v255
    %v261 = vld [vmem:[#allocation5] sm:$0xf]
    %v262 = vld [vmem:[#allocation5 + $0x4] sm:$0xf]
    %v263 = vld [vmem:[#allocation5 + $0x8] sm:$0xf]
    %v264 = vld [vmem:[#allocation5 + $0xc] sm:$0xf]
    %v265 = vld [vmem:[#allocation5 + $0x10] sm:$0xf]
    %v266 = vld [vmem:[#allocation5 + $0x14] sm:$0xf]
    %v267 = vld [vmem:[#allocation5 + $0x18] sm:$0xf]
    %v268 = vld [vmem:[#allocation5 + $0x1c] sm:$0xf]
    %v269 = vld [vmem:[#allocation5 + $0x20] sm:$0xf]
    %v270 = vld [vmem:[#allocation5 + $0x24] sm:$0xf]
    %v271 = vld [vmem:[#allocation5 + $0x28] sm:$0xf]
    %v272 = vld [vmem:[#allocation5 + $0x2c] sm:$0xf]
    %v273 = vld [vmem:[#allocation5 + $0x30] sm:$0xf]
    %v274 = vld [vmem:[#allocation5 + $0x34] sm:$0xf]
    %v275 = vld [vmem:[#allocation5 + $0x38] sm:$0xf]
    %v276 = vld [vmem:[#allocation5 + $0x3c] sm:$0xf]
    %v277 = vpack.c.bf16 %v196, %v196
    %v278 = vpack.c.bf16 %v202, %v202
    %v279 = vpack.c.bf16 %v208, %v208
    %v280 = vpack.c.bf16 %v214, %v214
    %v281 = vpack.c.bf16 %v220, %v220
    %v282 = vpack.c.bf16 %v226, %v226
    %v283 = vpack.c.bf16 %v232, %v232
    %v284 = vpack.c.bf16 %v238, %v238
    %v293 = vunpack.c.l.b16 %v277
    %v294 = vunpack.c.l.b16 %v278
    %v295 = vunpack.c.l.b16 %v279
    %v296 = vunpack.c.l.b16 %v280
    %v297 = vunpack.c.l.b16 %v281
    %v298 = vunpack.c.l.b16 %v282
    %v299 = vunpack.c.l.b16 %v283
    %v300 = vunpack.c.l.b16 %v284
    %vm301 = vcmask 1041409
    %v302 = vsel %vm301, %v294, %v293
    %vm303 = vcmask 1042434
    %v304 = vsel %vm303, %v295, %v302
    %vm305 = vcmask 1043459
    %v306 = vsel %vm305, %v296, %v304
    %vm307 = vcmask 1044484
    %v308 = vsel %vm307, %v297, %v306
    %vm309 = vcmask 1045509
    %v310 = vsel %vm309, %v298, %v308
    %vm311 = vcmask 1046534
    %v312 = vsel %vm311, %v299, %v310
    %vm313 = vcmask 1047559
    %v314 = vsel %vm313, %v300, %v312
    %v315 = vpack.c.b16 %v314, %v314
    %v333 = vunpack.c.l.b16 %v261
    %v334 = vunpack.c.l.b16 %v262
    %v335 = vunpack.c.l.b16 %v263
    %v336 = vunpack.c.l.b16 %v264
    %v337 = vunpack.c.l.b16 %v265
    %v338 = vunpack.c.l.b16 %v266
    %v339 = vunpack.c.l.b16 %v267
    %v340 = vunpack.c.l.b16 %v268
    %v341 = vunpack.c.l.b16 %v269
    %v342 = vunpack.c.l.b16 %v270
    %v343 = vunpack.c.l.b16 %v271
    %v344 = vunpack.c.l.b16 %v272
    %v345 = vunpack.c.l.b16 %v273
    %v346 = vunpack.c.l.b16 %v274
    %v347 = vunpack.c.l.b16 %v275
    %v348 = vunpack.c.l.b16 %v276
    %v349 = vpack.c.b16 %v334, %v333
    %v350 = vpack.c.b16 %v336, %v335
    %v351 = vpack.c.b16 %v338, %v337
    %v352 = vpack.c.b16 %v340, %v339
    %v353 = vpack.c.b16 %v342, %v341
    %v354 = vpack.c.b16 %v344, %v343
    %v355 = vpack.c.b16 %v346, %v345
    %v356 = vpack.c.b16 %v348, %v347
    %365 = vmatpush.bf16.msra.mxu0 %v356
    %366 = vmatpush.bf16.msra.mxu0 %v355
    %367 = vmatpush.bf16.msra.mxu0 %v354
    %368 = vmatpush.bf16.msra.mxu0 %v353
    %369 = vmatpush.bf16.msra.mxu0 %v352
    %370 = vmatpush.bf16.msra.mxu0 %v351
    %371 = vmatpush.bf16.msra.mxu0 %v350
    %372 = vmatpush.bf16.msra.mxu0 %v349
    %373 = vmatmul.bf16.gmra.mxu0 %v315
    %v374 = vpop.f32.mrf.mxu0
    %v375 = vadd.f32 0.0, %v374
    %v376 = vpop.f32.mrf.mxu0
    %377 = vdwg.mxu0
    %v378 = vmul.f32 %v375, %v260
    %v379 = vld [vmem:[#allocation5 + $0x40] sm:$0xf]
    %v380 = vld [vmem:[#allocation5 + $0x44] sm:$0xf]
    %v381 = vld [vmem:[#allocation5 + $0x48] sm:$0xf]
    %v382 = vld [vmem:[#allocation5 + $0x4c] sm:$0xf]
    %v383 = vld [vmem:[#allocation5 + $0x50] sm:$0xf]
    %v384 = vld [vmem:[#allocation5 + $0x54] sm:$0xf]
    %v385 = vld [vmem:[#allocation5 + $0x58] sm:$0xf]
    %v386 = vld [vmem:[#allocation5 + $0x5c] sm:$0xf]
    %v387 = vld [vmem:[#allocation5 + $0x60] sm:$0xf]
    %v388 = vld [vmem:[#allocation5 + $0x64] sm:$0xf]
    %v389 = vld [vmem:[#allocation5 + $0x68] sm:$0xf]
    %v390 = vld [vmem:[#allocation5 + $0x6c] sm:$0xf]
    %v391 = vld [vmem:[#allocation5 + $0x70] sm:$0xf]
    %v392 = vld [vmem:[#allocation5 + $0x74] sm:$0xf]
    %v393 = vld [vmem:[#allocation5 + $0x78] sm:$0xf]
    %v394 = vld [vmem:[#allocation5 + $0x7c] sm:$0xf]
    %v395 = vpack.c.bf16 %v378, %v378
    %v396 = vld [vmem:[#allocation7] sm:$0x1]
    %v397 = vperm.slane %v396, 0
    %v414 = vunpack.c.l.b16 %v379
    %v415 = vunpack.c.l.b16 %v380
    %v416 = vunpack.c.l.b16 %v381
    %v417 = vunpack.c.l.b16 %v382
    %v418 = vunpack.c.l.b16 %v383
    %v419 = vunpack.c.l.b16 %v384
    %v420 = vunpack.c.l.b16 %v385
    %v421 = vunpack.c.l.b16 %v386
    %v422 = vunpack.c.l.b16 %v387
    %v423 = vunpack.c.l.b16 %v388
    %v424 = vunpack.c.l.b16 %v389
    %v425 = vunpack.c.l.b16 %v390
    %v426 = vunpack.c.l.b16 %v391
    %v427 = vunpack.c.l.b16 %v392
    %v428 = vunpack.c.l.b16 %v393
    %v429 = vunpack.c.l.b16 %v394
    %v430 = vpack.c.b16 %v415, %v414
    %v431 = vpack.c.b16 %v417, %v416
    %v432 = vpack.c.b16 %v419, %v418
    %v433 = vpack.c.b16 %v421, %v420
    %v434 = vpack.c.b16 %v423, %v422
    %v435 = vpack.c.b16 %v425, %v424
    %v436 = vpack.c.b16 %v427, %v426
    %v437 = vpack.c.b16 %v429, %v428
    %446 = vmatpush.bf16.msra.mxu0 %v437
    %447 = vmatpush.bf16.msra.mxu0 %v436
    %448 = vmatpush.bf16.msra.mxu0 %v435
    %449 = vmatpush.bf16.msra.mxu0 %v434
    %450 = vmatpush.bf16.msra.mxu0 %v433
    %451 = vmatpush.bf16.msra.mxu0 %v432
    %452 = vmatpush.bf16.msra.mxu0 %v431
    %453 = vmatpush.bf16.msra.mxu0 %v430
    %454 = vmatmul.bf16.gmra.mxu0 %v395
    %v455 = vpop.f32.mrf.mxu0
    %v456 = vadd.f32 %v397, %v455
    %v457 = vpop.f32.mrf.mxu0
    %458 = vdwg.mxu0
    %v459 = vtanh.pop %v456
    %v460 = vld [vmem:[#allocation5 + $0x80] sm:$0xf]
    %v461 = vld [vmem:[#allocation5 + $0x84] sm:$0xf]
    %v462 = vld [vmem:[#allocation5 + $0x88] sm:$0xf]
    %v463 = vld [vmem:[#allocation5 + $0x8c] sm:$0xf]
    %v464 = vld [vmem:[#allocation5 + $0x90] sm:$0xf]
    %v465 = vld [vmem:[#allocation5 + $0x94] sm:$0xf]
    %v466 = vld [vmem:[#allocation5 + $0x98] sm:$0xf]
    %v467 = vld [vmem:[#allocation5 + $0x9c] sm:$0xf]
    %v468 = vld [vmem:[#allocation5 + $0xa0] sm:$0xf]
    %v469 = vld [vmem:[#allocation5 + $0xa4] sm:$0xf]
    %v470 = vld [vmem:[#allocation5 + $0xa8] sm:$0xf]
    %v471 = vld [vmem:[#allocation5 + $0xac] sm:$0xf]
    %v472 = vld [vmem:[#allocation5 + $0xb0] sm:$0xf]
    %v473 = vld [vmem:[#allocation5 + $0xb4] sm:$0xf]
    %v474 = vld [vmem:[#allocation5 + $0xb8] sm:$0xf]
    %v475 = vld [vmem:[#allocation5 + $0xbc] sm:$0xf]
    %v476 = vld [vmem:[#allocation5 + $0x100] sm:$0xf]
    %v477 = vld [vmem:[#allocation5 + $0x104] sm:$0xf]
    %v478 = vpack.c.bf16 %v459, %v459
    %v479 = vpack.c.bf16 %v59, %v59
    %481 = vrot.lane.b32.xlu0 %v479, 112
    %v482 = vpop.permute.xlu0 %481
    %v485 = vunpack.c.l.b16 %v476
    %v486 = vunpack.c.l.b16 %v477
    %v487 = vpack.c.b16 %v486, %v485
    %vm489 = vcmask 130048
    %v491 = vsel %vm489, %v482, 0
    %493 = vmatpush.bf16.msra.mxu0 0
    %494 = vmatpush.bf16.msra.mxu0 0
    %495 = vmatpush.bf16.msra.mxu0 0
    %496 = vmatpush.bf16.msra.mxu0 0
    %497 = vmatpush.bf16.msra.mxu0 0
    %498 = vmatpush.bf16.msra.mxu0 0
    %499 = vmatpush.bf16.msra.mxu0 0
    %500 = vmatpush.bf16.msra.mxu0 %v487
    %501 = vmatmul.bf16.gmra.mxu0 %v491
    %v502 = vpop.f32.mrf.mxu0
    %v503 = vadd.f32 0.0, %v502
    %v504 = vpop.f32.mrf.mxu0
    %505 = vdwg.mxu0
    %v522 = vunpack.c.l.b16 %v460
    %v523 = vunpack.c.l.b16 %v461
    %v524 = vunpack.c.l.b16 %v462
    %v525 = vunpack.c.l.b16 %v463
    %v526 = vunpack.c.l.b16 %v464
    %v527 = vunpack.c.l.b16 %v465
    %v528 = vunpack.c.l.b16 %v466
    %v529 = vunpack.c.l.b16 %v467
    %v530 = vunpack.c.l.b16 %v468
    %v531 = vunpack.c.l.b16 %v469
    %v532 = vunpack.c.l.b16 %v470
    %v533 = vunpack.c.l.b16 %v471
    %v534 = vunpack.c.l.b16 %v472
    %v535 = vunpack.c.l.b16 %v473
    %v536 = vunpack.c.l.b16 %v474
    %v537 = vunpack.c.l.b16 %v475
    %v538 = vpack.c.b16 %v523, %v522
    %v539 = vpack.c.b16 %v525, %v524
    %v540 = vpack.c.b16 %v527, %v526
    %v541 = vpack.c.b16 %v529, %v528
    %v542 = vpack.c.b16 %v531, %v530
    %v543 = vpack.c.b16 %v533, %v532
    %v544 = vpack.c.b16 %v535, %v534
    %v545 = vpack.c.b16 %v537, %v536
    %554 = vmatpush.bf16.msra.mxu0 %v545
    %555 = vmatpush.bf16.msra.mxu0 %v544
    %556 = vmatpush.bf16.msra.mxu0 %v543
    %557 = vmatpush.bf16.msra.mxu0 %v542
    %558 = vmatpush.bf16.msra.mxu0 %v541
    %559 = vmatpush.bf16.msra.mxu0 %v540
    %560 = vmatpush.bf16.msra.mxu0 %v539
    %561 = vmatpush.bf16.msra.mxu0 %v538
    %562 = vmatmul.bf16.gmra.mxu0 %v478
    %v563 = vpop.f32.mrf.mxu0
    %v564 = vadd.f32 %v503, %v563
    %v565 = vpop.f32.mrf.mxu0
    %566 = vdwg.mxu0
    %v567 = vld [vmem:[#allocation7 + $0x1] sm:$0x1]
    %v568 = vperm.slane %v567, 0
    %v569 = vadd.f32 %v564, %v568
    %v570 = vmax.f32 %v569, 0.0
    %v571 = vld [vmem:[#allocation5 + $0xc0] sm:$0xf]
    %v572 = vld [vmem:[#allocation5 + $0xc4] sm:$0xf]
    %v573 = vld [vmem:[#allocation5 + $0xc8] sm:$0xf]
    %v574 = vld [vmem:[#allocation5 + $0xcc] sm:$0xf]
    %v575 = vld [vmem:[#allocation5 + $0xd0] sm:$0xf]
    %v576 = vld [vmem:[#allocation5 + $0xd4] sm:$0xf]
    %v577 = vld [vmem:[#allocation5 + $0xd8] sm:$0xf]
    %v578 = vld [vmem:[#allocation5 + $0xdc] sm:$0xf]
    %v579 = vld [vmem:[#allocation5 + $0xe0] sm:$0xf]
    %v580 = vld [vmem:[#allocation5 + $0xe4] sm:$0xf]
    %v581 = vld [vmem:[#allocation5 + $0xe8] sm:$0xf]
    %v582 = vld [vmem:[#allocation5 + $0xec] sm:$0xf]
    %v583 = vld [vmem:[#allocation5 + $0xf0] sm:$0xf]
    %v584 = vld [vmem:[#allocation5 + $0xf4] sm:$0xf]
    %v585 = vld [vmem:[#allocation5 + $0xf8] sm:$0xf]
    %v586 = vld [vmem:[#allocation5 + $0xfc] sm:$0xf]
    %v587 = vpack.c.bf16 %v570, %v570
    %v588 = vld [vmem:[#allocation7 + $0x2] sm:$0x1]
    %v589 = vperm.slane %v588, 0
    %v606 = vunpack.c.l.b16 %v571
    %v607 = vunpack.c.l.b16 %v572
    %v608 = vunpack.c.l.b16 %v573
    %v609 = vunpack.c.l.b16 %v574
    %v610 = vunpack.c.l.b16 %v575
    %v611 = vunpack.c.l.b16 %v576
    %v612 = vunpack.c.l.b16 %v577
    %v613 = vunpack.c.l.b16 %v578
    %v614 = vunpack.c.l.b16 %v579
    %v615 = vunpack.c.l.b16 %v580
    %v616 = vunpack.c.l.b16 %v581
    %v617 = vunpack.c.l.b16 %v582
    %v618 = vunpack.c.l.b16 %v583
    %v619 = vunpack.c.l.b16 %v584
    %v620 = vunpack.c.l.b16 %v585
    %v621 = vunpack.c.l.b16 %v586
    %v622 = vpack.c.b16 %v607, %v606
    %v623 = vpack.c.b16 %v609, %v608
    %v624 = vpack.c.b16 %v611, %v610
    %v625 = vpack.c.b16 %v613, %v612
    %v626 = vpack.c.b16 %v615, %v614
    %v627 = vpack.c.b16 %v617, %v616
    %v628 = vpack.c.b16 %v619, %v618
    %v629 = vpack.c.b16 %v621, %v620
    %638 = vmatpush.bf16.msra.mxu0 %v629
    %639 = vmatpush.bf16.msra.mxu0 %v628
    %640 = vmatpush.bf16.msra.mxu0 %v627
    %641 = vmatpush.bf16.msra.mxu0 %v626
    %642 = vmatpush.bf16.msra.mxu0 %v625
    %643 = vmatpush.bf16.msra.mxu0 %v624
    %644 = vmatpush.bf16.msra.mxu0 %v623
    %645 = vmatpush.bf16.msra.mxu0 %v622
    %646 = vmatmul.bf16.gmra.mxu0 %v587
    %v647 = vpop.f32.mrf.mxu0
    %v648 = vadd.f32 %v589, %v647
    %v649 = vpop.f32.mrf.mxu0
    %650 = vdwg.mxu0
    %v651 = vpack.c.bf16 %v648, %v648
    %652 = vst [vmem:[#allocation8] sm:$0xf] %v651
    // Predicated region
    $region26: #{tpu_custom_call.1} parent=1 // pred_check
      _
    $region27: #{tpu_custom_call.1} parent=1 // pred_check_branch
      %654 = sbr.rel (0) target = $region29
    $region28: #{tpu_custom_call.1} parent=1 // pred_region
      %656 = vsyncadd [#allocation4], 0
      %s658 = sshll.u32 [#allocation8], 4
      %s659 = int_to_ptr.vmem [resolvable:$true] %s658
      %s660 = sshll.u32 %s3, 4
      %s661 = int_to_ptr.hbm [resolvable:$true] %s660
      %663 = dma.vmem_to_hbm [thread:$0]  %s659, 64, %s661, [#allocation4]
    $region29: #{tpu_custom_call.1} parent=1 // pred_fallthru
      _
    // Predicated region
    $region30: #{tpu_custom_call.1} parent=1 // pred_check
      _
    $region31: #{tpu_custom_call.1} parent=1 // pred_check_branch
      %665 = sbr.rel (0) target = $region33
    $region32: #{tpu_custom_call.1} parent=1 // pred_region
      %667 = dma.done [#allocation4], 64
    $region33: #{tpu_custom_call.1} parent=1 // pred_fallthru
      _
    %668 = vsyncpa [#allocation3], 1
    %669 = vsyncpa [#allocation6], 1
    %670 = vsyncpa [#allocation4], 1

</llo_original>
